<compile_context>
chip_gen: v6e
topology: v6e:2x2x1
jax: 0.10.0
libtpu: 0.0.40
codegen_flags: <defaults>
</compile_context>

<pallas_src>
import jax
import jax.numpy as jnp
from jax.experimental import pallas as pl
from jax.experimental.pallas import tpu as pltpu


def _attention_kernel(x_ref, w1t_ref, b1_ref, w2t_ref, b2_ref, o_ref):
    # x: (tb, F) f32   w1t: (F, H) bf16   b1: (1, H) f32
    # w2t: (H, F) bf16 b2: (1, F) f32     o: (tb, F) f32 (feats dtype)
    # Cast to bf16 on the VPU (hidden under the DMA) right before the MXU dot.
    x = x_ref[...].astype(jnp.bfloat16)
    # fc1: bf16 operands on the MXU, f32 accumulation; bias + ReLU in f32.
    h = jnp.dot(x, w1t_ref[...], preferred_element_type=jnp.float32) + b1_ref[...]
    h = jnp.maximum(h, 0.0)
    # fc2: downcast only the matmul operand to bf16; epilogue stays f32.
    y = jnp.dot(h.astype(jnp.bfloat16), w2t_ref[...],
                preferred_element_type=jnp.float32) + b2_ref[...]
    o_ref[...] = jax.nn.sigmoid(y).astype(o_ref.dtype)


def _round_up(x, m):
    return (x + m - 1) // m * m


def basic_attention_pallas(feats, w1, b1, w2, b2, *, block_b=4096):
    """feats: (B, feat_dim) f32.
    w1: (hidden, feat_dim), b1: (hidden,)   -- fc1 (PyTorch nn.Linear layout)
    w2: (feat_dim, hidden), b2: (feat_dim,) -- fc2 (PyTorch nn.Linear layout)
    Returns sigmoid(fc2(relu(fc1(feats)))) with shape (B, feat_dim), dtype of feats.
    """
    B, F = feats.shape
    H = w1.shape[0]
    out_dtype = feats.dtype

    # --- Batch tile selection -------------------------------------------------
    # Large tiles amortize the ~0.35us/step pipeline overhead; cap so the
    # double-buffered f32 input + f32 output tiles stay well inside v7x's 64 MiB VMEM.
    block_b = max(8, min(int(block_b), 8192))
    if B <= block_b:
        if B > 1024:
            # Mid-size batch: split into (at least) 2 steps so the "parallel" grid
            # axis can shard across v7x's two TensorCores.
            block_b = _round_up((B + 1) // 2, 8)
        else:
            # Small batch: single tile, rounded up to the sublane multiple.
            block_b = _round_up(B, 8)

    grid = (pl.cdiv(B, block_b),)   # ragged last block handled by Pallas; no jnp.pad

    # --- Operands ---------------------------------------------------------------
    # feats stays f32 (cast to bf16 inside the kernel); weights are tiny, one-time bf16.
    w1t = w1.T.astype(jnp.bfloat16)               # (F, H)
    w2t = w2.T.astype(jnp.bfloat16)               # (H, F)
    b1_2d = b1.reshape(1, H).astype(jnp.float32)
    b2_2d = b2.reshape(1, F).astype(jnp.float32)

    # --- VMEM budget --------------------------------------------------------------
    in_bytes = block_b * F * jnp.dtype(feats.dtype).itemsize
    out_bytes = block_b * F * jnp.dtype(out_dtype).itemsize
    weight_bytes = 2 * F * H * 2 + (H + F) * 4
    # 2x for double buffering of the pipelined in/out tiles, + resident weights + headroom.
    vmem_limit = 2 * (in_bytes + out_bytes) + 2 * weight_bytes + (4 << 20)
    vmem_limit = int(max(16 * 1024 * 1024, min(vmem_limit, 48 * 1024 * 1024)))

    cost = pl.CostEstimate(
        flops=4 * B * F * H,                                   # fc1 + fc2
        bytes_accessed=B * F * (jnp.dtype(feats.dtype).itemsize
                                + jnp.dtype(out_dtype).itemsize) + weight_bytes,
        transcendentals=B * F,                                 # sigmoid
    )

    out = pl.pallas_call(
        _attention_kernel,
        out_shape=jax.ShapeDtypeStruct((B, F), out_dtype),
        grid_spec=pltpu.PrefetchScalarGridSpec(
            num_scalar_prefetch=0,
            grid=grid,
            in_specs=[
                pl.BlockSpec((block_b, F), lambda i: (i, 0)),   # feats tile (pipelined)
                pl.BlockSpec((F, H), lambda i: (0, 0)),         # w1^T, resident
                pl.BlockSpec((1, H), lambda i: (0, 0)),         # b1,   resident
                pl.BlockSpec((H, F), lambda i: (0, 0)),         # w2^T, resident
                pl.BlockSpec((1, F), lambda i: (0, 0)),         # b2,   resident
            ],
            out_specs=pl.BlockSpec((block_b, F), lambda i: (i, 0)),
        ),
        compiler_params=pltpu.CompilerParams(
            dimension_semantics=("parallel",),   # batch grid shards across TCs (v7x)
            vmem_limit_bytes=vmem_limit,
        ),
        cost_estimate=cost,
    )(feats, w1t, b1_2d, w2t, b2_2d)

    return out


def basic_attention_ref(feats, w1, b1, w2, b2):
    h = jnp.maximum(feats @ w1.T + b1, 0.0)
    return jax.nn.sigmoid(h @ w2.T + b2)


if __name__ == "__main__":
    key = jax.random.PRNGKey(0)
    # Small test shape consistent with the module; B=20 exercises the ragged-tail path.
    B, feat_dim, reduction_ratio = 20, 256, 8
    hidden = feat_dim // reduction_ratio  # 32

    k_x, k_w1, k_b1, k_w2, k_b2 = jax.random.split(key, 5)
    feats = jax.random.normal(k_x, (B, feat_dim), dtype=jnp.float32)
    # PyTorch nn.Linear parameter shapes: (out, in) weight + (out,) bias.
    w1 = jax.random.normal(k_w1, (hidden, feat_dim), dtype=jnp.float32) * 0.05
    b1 = jax.random.normal(k_b1, (hidden,), dtype=jnp.float32) * 0.05
    w2 = jax.random.normal(k_w2, (feat_dim, hidden), dtype=jnp.float32) * 0.05
    b2 = jax.random.normal(k_b2, (feat_dim,), dtype=jnp.float32) * 0.05

    ref = basic_attention_ref(feats, w1, b1, w2, b2)

    # Default large-tile path (single tile here since B is tiny).
    out = jax.block_until_ready(basic_attention_pallas(feats, w1, b1, w2, b2))
    assert out.shape == (B, feat_dim)
    # bf16 matmul operands -> loosen tolerance vs f32 reference (sigmoid output in [0,1]).
    assert jnp.allclose(out, ref, atol=3e-2, rtol=3e-2), "mismatch vs reference (default tile)"

    # Multi-step grid + ragged tail path (block_b=8, B=20 -> 3 grid steps).
    out_small = jax.block_until_ready(
        basic_attention_pallas(feats, w1, b1, w2, b2, block_b=8))
    assert out_small.shape == (B, feat_dim)
    assert jnp.allclose(out_small, ref, atol=3e-2, rtol=3e-2), "mismatch vs reference (tiled)"

    print("KERNEL_OK")
</pallas_src>

<mosaic_0001>
module attributes {stable_mosaic.version = 11 : i64} {
  func.func @_attention_kernel(%arg0: i32, %arg1: memref<24x256xf32, #tpu.memory_space<vmem>>, %arg2: memref<256x32xbf16, #tpu.memory_space<vmem>>, %arg3: memref<1x32xf32, #tpu.memory_space<vmem>>, %arg4: memref<32x256xbf16, #tpu.memory_space<vmem>>, %arg5: memref<1x256xf32, #tpu.memory_space<vmem>>, %arg6: memref<24x256xf32, #tpu.memory_space<vmem>>) attributes {dimension_semantics = [#tpu.dimension_semantics<parallel>], iteration_bounds = array<i64: 1>, scalar_prefetch = 0 : i64, scratch_operands = 0 : i64, tpu.core_type = #tpu.core_type<tc>, window_params = [{transform_indices = @transform_0, window_bounds = array<i64: 24, 256>}, {pipeline_mode = #tpu.pipeline_mode<synchronous>, transform_indices = @transform_1, window_bounds = array<i64: 256, 32>}, {pipeline_mode = #tpu.pipeline_mode<synchronous>, transform_indices = @transform_2, window_bounds = array<i64: 1, 32>}, {pipeline_mode = #tpu.pipeline_mode<synchronous>, transform_indices = @transform_3, window_bounds = array<i64: 32, 256>}, {pipeline_mode = #tpu.pipeline_mode<synchronous>, transform_indices = @transform_4, window_bounds = array<i64: 1, 256>}, {transform_indices = @transform_5, window_bounds = array<i64: 24, 256>}]} {
    %c0 = arith.constant 0 : index
    %c0_0 = arith.constant 0 : index
    %0 = vector.load %arg1[%c0, %c0_0] : memref<24x256xf32, #tpu.memory_space<vmem>>, vector<24x256xf32>
    %1 = arith.truncf %0 : vector<24x256xf32> to vector<24x256xbf16>
    %c0_1 = arith.constant 0 : index
    %c0_2 = arith.constant 0 : index
    %2 = vector.load %arg2[%c0_1, %c0_2] : memref<256x32xbf16, #tpu.memory_space<vmem>>, vector<256x32xbf16>
    %cst = arith.constant dense<0.000000e+00> : vector<24x32xf32>
    %3 = tpu.matmul %1, %2, %cst {dimension_numbers = #tpu.dot_dimension_numbers<[1], [0], [0], [1], [0, 0, 1, 1], [], []>} : vector<24x256xbf16>, vector<256x32xbf16>, vector<24x32xf32> -> vector<24x32xf32>
    %c0_3 = arith.constant 0 : index
    %c0_4 = arith.constant 0 : index
    %4 = vector.load %arg3[%c0_3, %c0_4] : memref<1x32xf32, #tpu.memory_space<vmem>>, vector<1x32xf32>
    %5 = vector.broadcast %4 : vector<1x32xf32> to vector<24x32xf32>
    %6 = arith.addf %3, %5 : vector<24x32xf32>
    %cst_5 = arith.constant 0.000000e+00 : f32
    %7 = vector.broadcast %cst_5 : f32 to vector<24x32xf32>
    %8 = arith.maximumf %6, %7 : vector<24x32xf32>
    %9 = arith.truncf %8 : vector<24x32xf32> to vector<24x32xbf16>
    %c0_6 = arith.constant 0 : index
    %c0_7 = arith.constant 0 : index
    %10 = vector.load %arg4[%c0_6, %c0_7] : memref<32x256xbf16, #tpu.memory_space<vmem>>, vector<32x256xbf16>
    %cst_8 = arith.constant dense<0.000000e+00> : vector<24x256xf32>
    %11 = tpu.matmul %9, %10, %cst_8 {dimension_numbers = #tpu.dot_dimension_numbers<[1], [0], [0], [1], [0, 0, 1, 1], [], []>} : vector<24x32xbf16>, vector<32x256xbf16>, vector<24x256xf32> -> vector<24x256xf32>
    %c0_9 = arith.constant 0 : index
    %c0_10 = arith.constant 0 : index
    %12 = vector.load %arg5[%c0_9, %c0_10] : memref<1x256xf32, #tpu.memory_space<vmem>>, vector<1x256xf32>
    %13 = vector.broadcast %12 : vector<1x256xf32> to vector<24x256xf32>
    %14 = arith.addf %11, %13 : vector<24x256xf32>
    %15 = arith.negf %14 : vector<24x256xf32>
    %16 = math.exp %15 : vector<24x256xf32>
    %cst_11 = arith.constant 1.000000e+00 : f32
    %17 = vector.broadcast %cst_11 : f32 to vector<24x256xf32>
    %18 = arith.addf %17, %16 : vector<24x256xf32>
    %19 = arith.divf %17, %18 : vector<24x256xf32>
    %c0_12 = arith.constant 0 : index
    %c0_13 = arith.constant 0 : index
    %20 = vector.load %arg6[%c0_12, %c0_13] : memref<24x256xf32, #tpu.memory_space<vmem>>, vector<24x256xf32>
    tpu.vector_store %arg6[%c0_12, %c0_13], %19 {strides = array<i32>} : memref<24x256xf32, #tpu.memory_space<vmem>>, vector<24x256xf32>,
    return
  }
  func.func @transform_0(%arg0: i32) -> (i32, i32) {
    %c0_i32 = arith.constant 0 : i32
    %c0_i32_0 = arith.constant 0 : i32
    return %arg0, %c0_i32 : i32, i32
  }
  func.func @transform_1(%arg0: i32) -> (i32, i32) {
    %c0_i32 = arith.constant 0 : i32
    %c0_i32_0 = arith.constant 0 : i32
    %c0_i32_1 = arith.constant 0 : i32
    return %c0_i32, %c0_i32_0 : i32, i32
  }
  func.func @transform_2(%arg0: i32) -> (i32, i32) {
    %c0_i32 = arith.constant 0 : i32
    %c0_i32_0 = arith.constant 0 : i32
    %c0_i32_1 = arith.constant 0 : i32
    return %c0_i32, %c0_i32_0 : i32, i32
  }
  func.func @transform_3(%arg0: i32) -> (i32, i32) {
    %c0_i32 = arith.constant 0 : i32
    %c0_i32_0 = arith.constant 0 : i32
    %c0_i32_1 = arith.constant 0 : i32
    return %c0_i32, %c0_i32_0 : i32, i32
  }
  func.func @transform_4(%arg0: i32) -> (i32, i32) {
    %c0_i32 = arith.constant 0 : i32
    %c0_i32_0 = arith.constant 0 : i32
    %c0_i32_1 = arith.constant 0 : i32
    return %c0_i32, %c0_i32_0 : i32, i32
  }
  func.func @transform_5(%arg0: i32) -> (i32, i32) {
    %c0_i32 = arith.constant 0 : i32
    %c0_i32_0 = arith.constant 0 : i32
    return %arg0, %c0_i32 : i32, i32
  }
}

</mosaic_0001>

<llo_original>
// kernel: tpu_custom_call.1
$region0: #{tpu_custom_call.1}
  #allocation0 [shape = 'u32[]', space=smem, size = 0x4, offset = 0x4, fixed_abs, tag = 'smem constant byte address 0x4 - core index']
  #allocation1 [shape = 'u32[144,128]{1,0:T(1,128)}', space=vmem, size = 0x12000, scoped, tag = 'internal scratch']
  %s0 = inlined_call_operand.vmem [shape: f32[20,256], index: 0, kind: input, shape index: {}]
  %s1 = inlined_call_operand.vmem [shape: bf16[256,32], index: 1, kind: input, shape index: {}]
  %s2 = inlined_call_operand.vmem [shape: f32[1,32], index: 2, kind: input, shape index: {}]
  %s3 = inlined_call_operand.vmem [shape: bf16[32,256], index: 3, kind: input, shape index: {}]
  %s4 = inlined_call_operand.vmem [shape: f32[1,256], index: 4, kind: input, shape index: {}]
  %s5 = inlined_call_operand.hbm [shape: f32[20,256], index: 5, kind: output, shape index: {}]
  %s6 = sld [smem:[#allocation0]]
  $region30: #{tpu_custom_call.1} parent=0
    _
  %s8 = ssub.s32 1, %s6
  %s9 = scalar_select 0, %s8, %s6
  $region1: #{tpu_custom_call.1} parent=0
    #allocation2 [shape = 'u8[24576]{0}', space=vmem, size = 0x6000, scoped, tag = 'output window, operand 0, single buffered']
    #allocation3 [shape = 's32[1]{0}', space=sflag, size = 0x4, scoped, tag = 'scoped memory for tpu_custom_call.1']
    %10 = vsyncpa [#allocation3], 0
    // Predicated region
    $region2: #{tpu_custom_call.1} parent=1 // pred_check
      _
    $region3: #{tpu_custom_call.1} parent=1 // pred_check_branch
      %12 = sbr.rel (0) target = $region5
    $region4: #{tpu_custom_call.1} parent=1 // pred_region
      _
    $region5: #{tpu_custom_call.1} parent=1 // pred_fallthru
      _
    // Predicated region
    $region6: #{tpu_custom_call.1} parent=1 // pred_check
      _
    $region7: #{tpu_custom_call.1} parent=1 // pred_check_branch
      %14 = sbr.rel (0) target = $region9
    $region8: #{tpu_custom_call.1} parent=1 // pred_region
      _
    $region9: #{tpu_custom_call.1} parent=1 // pred_fallthru
      _
    // Predicated region
    $region10: #{tpu_custom_call.1} parent=1 // pred_check
      _
    $region11: #{tpu_custom_call.1} parent=1 // pred_check_branch
      %16 = sbr.rel (0) target = $region13
    $region12: #{tpu_custom_call.1} parent=1 // pred_region
      _
    $region13: #{tpu_custom_call.1} parent=1 // pred_fallthru
      _
    // Predicated region
    $region14: #{tpu_custom_call.1} parent=1 // pred_check
      _
    $region15: #{tpu_custom_call.1} parent=1 // pred_check_branch
      %18 = sbr.rel (0) target = $region17
    $region16: #{tpu_custom_call.1} parent=1 // pred_region
      _
    $region17: #{tpu_custom_call.1} parent=1 // pred_fallthru
      _
    // Predicated region
    $region18: #{tpu_custom_call.1} parent=1 // pred_check
      _
    $region19: #{tpu_custom_call.1} parent=1 // pred_check_branch
      %20 = sbr.rel (0) target = $region21
    $region20: #{tpu_custom_call.1} parent=1 // pred_region
      _
    $region21: #{tpu_custom_call.1} parent=1 // pred_fallthru
      _
    %v22 = vld [vmem:[%s0] sm:$0xff]
    %v23 = vld [vmem:[%s0 + $0x8] sm:$0xff]
    %v24 = vld [vmem:[%s0 + $0x10] sm:$0xff]
    %v25 = vld [vmem:[%s0 + $0x18] sm:$0xff]
    %v26 = vld [vmem:[%s0 + $0x20] sm:$0xff]
    %v27 = vld [vmem:[%s0 + $0x28] sm:$0xff]
    %v28 = vpack.c.bf16 %v24, %v22
    %v29 = vpack.c.bf16 %v25, %v23
    %v30 = vpack.c.bf16 %v26, %v26
    %v31 = vpack.c.bf16 %v27, %v27
    %v32 = vld [vmem:[%s1] sm:$0xf]
    %v33 = vld [vmem:[%s1 + $0x4] sm:$0xf]
    %v34 = vld [vmem:[%s1 + $0x8] sm:$0xf]
    %v35 = vld [vmem:[%s1 + $0xc] sm:$0xf]
    %v36 = vld [vmem:[%s1 + $0x10] sm:$0xf]
    %v37 = vld [vmem:[%s1 + $0x14] sm:$0xf]
    %v38 = vld [vmem:[%s1 + $0x18] sm:$0xf]
    %v39 = vld [vmem:[%s1 + $0x1c] sm:$0xf]
    %v40 = vld [vmem:[%s1 + $0x20] sm:$0xf]
    %v41 = vld [vmem:[%s1 + $0x24] sm:$0xf]
    %v42 = vld [vmem:[%s1 + $0x28] sm:$0xf]
    %v43 = vld [vmem:[%s1 + $0x2c] sm:$0xf]
    %v44 = vld [vmem:[%s1 + $0x30] sm:$0xf]
    %v45 = vld [vmem:[%s1 + $0x34] sm:$0xf]
    %v46 = vld [vmem:[%s1 + $0x38] sm:$0xf]
    %v47 = vld [vmem:[%s1 + $0x3c] sm:$0xf]
    %v48 = vld [vmem:[%s1 + $0x40] sm:$0xf]
    %v49 = vld [vmem:[%s1 + $0x44] sm:$0xf]
    %v50 = vld [vmem:[%s1 + $0x48] sm:$0xf]
    %v51 = vld [vmem:[%s1 + $0x4c] sm:$0xf]
    %v52 = vld [vmem:[%s1 + $0x50] sm:$0xf]
    %v53 = vld [vmem:[%s1 + $0x54] sm:$0xf]
    %v54 = vld [vmem:[%s1 + $0x58] sm:$0xf]
    %v55 = vld [vmem:[%s1 + $0x5c] sm:$0xf]
    %v56 = vld [vmem:[%s1 + $0x60] sm:$0xf]
    %v57 = vld [vmem:[%s1 + $0x64] sm:$0xf]
    %v58 = vld [vmem:[%s1 + $0x68] sm:$0xf]
    %v59 = vld [vmem:[%s1 + $0x6c] sm:$0xf]
    %v60 = vld [vmem:[%s1 + $0x70] sm:$0xf]
    %v61 = vld [vmem:[%s1 + $0x74] sm:$0xf]
    %v62 = vld [vmem:[%s1 + $0x78] sm:$0xf]
    %v63 = vld [vmem:[%s1 + $0x7c] sm:$0xf]
    %v64 = vld [vmem:[%s2] sm:$0x1]
    %v66 = vlaneseq
    %v67 = vshrl.u32 %v66, 7
    %v68 = vsub.s32 0, %v67
    %v69 = vrot.slane %v64, %v68
    %v103 = vunpack.c.l.b16 %v32
    %v104 = vunpack.c.l.b16 %v33
    %v105 = vunpack.c.l.b16 %v34
    %v106 = vunpack.c.l.b16 %v35
    %v107 = vunpack.c.l.b16 %v36
    %v108 = vunpack.c.l.b16 %v37
    %v109 = vunpack.c.l.b16 %v38
    %v110 = vunpack.c.l.b16 %v39
    %v111 = vunpack.c.l.b16 %v40
    %v112 = vunpack.c.l.b16 %v41
    %v113 = vunpack.c.l.b16 %v42
    %v114 = vunpack.c.l.b16 %v43
    %v115 = vunpack.c.l.b16 %v44
    %v116 = vunpack.c.l.b16 %v45
    %v117 = vunpack.c.l.b16 %v46
    %v118 = vunpack.c.l.b16 %v47
    %v119 = vunpack.c.l.b16 %v48
    %v120 = vunpack.c.l.b16 %v49
    %v121 = vunpack.c.l.b16 %v50
    %v122 = vunpack.c.l.b16 %v51
    %v123 = vunpack.c.l.b16 %v52
    %v124 = vunpack.c.l.b16 %v53
    %v125 = vunpack.c.l.b16 %v54
    %v126 = vunpack.c.l.b16 %v55
    %v127 = vunpack.c.l.b16 %v56
    %v128 = vunpack.c.l.b16 %v57
    %v129 = vunpack.c.l.b16 %v58
    %v130 = vunpack.c.l.b16 %v59
    %v131 = vunpack.c.l.b16 %v60
    %v132 = vunpack.c.l.b16 %v61
    %v133 = vunpack.c.l.b16 %v62
    %v134 = vunpack.c.l.b16 %v63
    %v135 = vpack.c.b16 %v104, %v103
    %v136 = vpack.c.b16 %v106, %v105
    %v137 = vpack.c.b16 %v108, %v107
    %v138 = vpack.c.b16 %v110, %v109
    %v139 = vpack.c.b16 %v112, %v111
    %v140 = vpack.c.b16 %v114, %v113
    %v141 = vpack.c.b16 %v116, %v115
    %v142 = vpack.c.b16 %v118, %v117
    %v143 = vpack.c.b16 %v120, %v119
    %v144 = vpack.c.b16 %v122, %v121
    %v145 = vpack.c.b16 %v124, %v123
    %v146 = vpack.c.b16 %v126, %v125
    %v147 = vpack.c.b16 %v128, %v127
    %v148 = vpack.c.b16 %v130, %v129
    %v149 = vpack.c.b16 %v132, %v131
    %v150 = vpack.c.b16 %v134, %v133
    %167 = vmatprep.subr.bf16.mxu0 0
    %168 = vmatpush1.bf16.msra.mxu0 %v142
    %169 = vmatprep.subr.bf16.mxu0 0
    %170 = vmatpush1.bf16.msra.mxu0 %v141
    %171 = vmatprep.subr.bf16.mxu0 0
    %172 = vmatpush1.bf16.msra.mxu0 %v140
    %173 = vmatprep.subr.bf16.mxu0 0
    %174 = vmatpush1.bf16.msra.mxu0 %v139
    %175 = vmatprep.subr.bf16.mxu0 0
    %176 = vmatpush1.bf16.msra.mxu0 %v138
    %177 = vmatprep.subr.bf16.mxu0 0
    %178 = vmatpush1.bf16.msra.mxu0 %v137
    %179 = vmatprep.subr.bf16.mxu0 0
    %180 = vmatpush1.bf16.msra.mxu0 %v136
    %181 = vmatprep.subr.bf16.mxu0 0
    %182 = vmatpush1.bf16.msra.mxu0 %v135
    %183 = vmatprep.subr.bf16.mxu0 0
    %184 = vmatpush2.bf16.msra.mxu0 %v150
    %185 = vmatprep.subr.bf16.mxu0 0
    %186 = vmatpush2.bf16.msra.mxu0 %v149
    %187 = vmatprep.subr.bf16.mxu0 0
    %188 = vmatpush2.bf16.msra.mxu0 %v148
    %189 = vmatprep.subr.bf16.mxu0 0
    %190 = vmatpush2.bf16.msra.mxu0 %v147
    %191 = vmatprep.subr.bf16.mxu0 0
    %192 = vmatpush2.bf16.msra.mxu0 %v146
    %193 = vmatprep.subr.bf16.mxu0 0
    %194 = vmatpush2.bf16.msra.mxu0 %v145
    %195 = vmatprep.subr.bf16.mxu0 0
    %196 = vmatpush2.bf16.msra.mxu0 %v144
    %197 = vmatprep.subr.bf16.mxu0 0
    %198 = vmatpush2.bf16.msra.mxu0 %v143
    %199 = vmatprep.mubr.bf16.mxu0 %v29
    %200 = vmatmul.mubr.bf16.gmra.mxu0 %v28
    %v201 = vpop.f32.mrf.mxu0
    %v202 = vadd.f32 %v69, %v201
    %v203 = vpop.f32.mrf.mxu0
    %v204 = vpop.f32.mrf.mxu0
    %v205 = vadd.f32 %v69, %v204
    %v206 = vpop.f32.mrf.mxu0
    %207 = vmatprep.mubr.bf16.mxu0 %v31
    %208 = vmatmul.mubr.bf16.gmra.mxu0 %v30
    %v209 = vpop.f32.mrf.mxu0
    %v210 = vadd.f32 %v69, %v209
    %v211 = vpop.f32.mrf.mxu0
    %v212 = vpop.f32.mrf.mxu0
    %v213 = vpop.f32.mrf.mxu0
    %214 = vdwg.mxu0
    %v215 = vmax.f32 %v202, 0.0
    %v216 = vmax.f32 %v205, 0.0
    %v217 = vmax.f32 %v210, 0.0
    %v218 = vpack.c.bf16 %v216, %v215
    %v219 = vpack.c.bf16 %v217, %v217
    %v220 = vld [vmem:[%s3] sm:$0xff]
    %v221 = vld [vmem:[%s3 + $0x8] sm:$0xff]
    %v222 = vld [vmem:[%s3 + $0x10] sm:$0xff]
    %v223 = vld [vmem:[%s3 + $0x18] sm:$0xff]
    %v224 = vld [vmem:[%s4] sm:$0x3]
    %v226 = vlaneseq
    %v227 = vshrl.u32 %v226, 7
    %v228 = vsub.s32 0, %v227
    %v229 = vrot.slane %v224, %v228
    %v230 = vlaneseq
    %v231 = vshrl.u32 %v230, 7
    %v232 = vsub.s32 1, %v231
    %v233 = vrot.slane %v224, %v232
    %v240 = vunpack.c.l.b16 %v220
    %v241 = vunpack.c.h.b16 %v220
    %v242 = vunpack.c.l.b16 %v221
    %v243 = vunpack.c.h.b16 %v221
    %v244 = vunpack.c.l.b16 %v222
    %v245 = vunpack.c.h.b16 %v222
    %v246 = vunpack.c.l.b16 %v223
    %v247 = vunpack.c.h.b16 %v223
    %v248 = vpack.c.b16 %v242, %v240
    %v249 = vpack.c.b16 %v243, %v241
    %v250 = vpack.c.b16 %v246, %v244
    %v251 = vpack.c.b16 %v247, %v245
    %vm256 = vcmask 261120
    %v258 = vsel %vm256, %v218, 0
    %v261 = vsel %vm256, %v219, 0
    %263 = vmatprep.subr.bf16.mxu0 0
    %264 = vmatpush1.bf16.msra.mxu0 0
    %265 = vmatprep.subr.bf16.mxu0 0
    %266 = vmatpush1.bf16.msra.mxu0 0
    %267 = vmatprep.subr.bf16.mxu0 0
    %268 = vmatpush1.bf16.msra.mxu0 0
    %269 = vmatprep.subr.bf16.mxu0 0
    %270 = vmatpush1.bf16.msra.mxu0 0
    %271 = vmatprep.subr.bf16.mxu0 0
    %272 = vmatpush1.bf16.msra.mxu0 0
    %273 = vmatprep.subr.bf16.mxu0 0
    %274 = vmatpush1.bf16.msra.mxu0 0
    %275 = vmatprep.subr.bf16.mxu0 %v251
    %276 = vmatpush1.bf16.msra.mxu0 %v250
    %277 = vmatprep.subr.bf16.mxu0 %v249
    %278 = vmatpush1.bf16.msra.mxu0 %v248
    %279 = vmatprep.subr.bf16.mxu0 0
    %280 = vmatpush2.bf16.msra.mxu0 0
    %281 = vmatprep.subr.bf16.mxu0 0
    %282 = vmatpush2.bf16.msra.mxu0 0
    %283 = vmatprep.subr.bf16.mxu0 0
    %284 = vmatpush2.bf16.msra.mxu0 0
    %285 = vmatprep.subr.bf16.mxu0 0
    %286 = vmatpush2.bf16.msra.mxu0 0
    %287 = vmatprep.subr.bf16.mxu0 0
    %288 = vmatpush2.bf16.msra.mxu0 0
    %289 = vmatprep.subr.bf16.mxu0 0
    %290 = vmatpush2.bf16.msra.mxu0 0
    %291 = vmatprep.subr.bf16.mxu0 0
    %292 = vmatpush2.bf16.msra.mxu0 0
    %293 = vmatprep.subr.bf16.mxu0 0
    %294 = vmatpush2.bf16.msra.mxu0 0
    %295 = vmatprep.mubr.bf16.mxu0 0
    %296 = vmatmul.mubr.bf16.gmra.mxu0 %v258
    %v297 = vpop.f32.mrf.mxu0
    %v298 = vadd.f32 %v229, %v297
    %v299 = vpop.f32.mrf.mxu0
    %v300 = vadd.f32 %v233, %v299
    %v301 = vpop.f32.mrf.mxu0
    %v302 = vadd.f32 %v229, %v301
    %v303 = vpop.f32.mrf.mxu0
    %v304 = vadd.f32 %v233, %v303
    %305 = vmatprep.mubr.bf16.mxu0 0
    %306 = vmatmul.mubr.bf16.gmra.mxu0 %v261
    %v307 = vpop.f32.mrf.mxu0
    %v308 = vadd.f32 %v229, %v307
    %v309 = vpop.f32.mrf.mxu0
    %v310 = vadd.f32 %v233, %v309
    %v311 = vpop.f32.mrf.mxu0
    %v312 = vpop.f32.mrf.mxu0
    %313 = vdwg.mxu0
    %v314 = vxor.u32 %v298, 2147483648
    %v315 = vxor.u32 %v300, 2147483648
    %v316 = vxor.u32 %v302, 2147483648
    %v317 = vxor.u32 %v304, 2147483648
    %v318 = vxor.u32 %v308, 2147483648
    %v319 = vxor.u32 %v310, 2147483648
    %v320 = vmul.f32 %v314, 1.442695
    %v321 = vpow.pop %v320
    %v322 = vmul.f32 %v315, 1.442695
    %v323 = vpow.pop %v322
    %v324 = vmul.f32 %v316, 1.442695
    %v325 = vpow.pop %v324
    %v326 = vmul.f32 %v317, 1.442695
    %v327 = vpow.pop %v326
    %v328 = vmul.f32 %v318, 1.442695
    %v329 = vpow.pop %v328
    %v330 = vmul.f32 %v319, 1.442695
    %v331 = vpow.pop %v330
    %v332 = vadd.f32 %v321, 1.0
    %v333 = vadd.f32 %v323, 1.0
    %v334 = vadd.f32 %v325, 1.0
    %v335 = vadd.f32 %v327, 1.0
    %v336 = vadd.f32 %v329, 1.0
    %v337 = vadd.f32 %v331, 1.0
    %v338 = vrcp.pop %v332
    %v339 = vmul.f32 1.0, %v338
    %v340 = vrcp.pop %v333
    %v341 = vmul.f32 1.0, %v340
    %v342 = vrcp.pop %v334
    %v343 = vmul.f32 1.0, %v342
    %v344 = vrcp.pop %v335
    %v345 = vmul.f32 1.0, %v344
    %v346 = vrcp.pop %v336
    %v347 = vmul.f32 1.0, %v346
    %v348 = vrcp.pop %v337
    %v349 = vmul.f32 1.0, %v348
    %350 = vst [vmem:[#allocation2] sm:$0xff] %v339
    %351 = vst [vmem:[#allocation2 + $0x8] sm:$0xff] %v341
    %352 = vst [vmem:[#allocation2 + $0x10] sm:$0xff] %v343
    %353 = vst [vmem:[#allocation2 + $0x18] sm:$0xff] %v345
    %354 = vst [vmem:[#allocation2 + $0x20] sm:$0xff] %v347
    %355 = vst [vmem:[#allocation2 + $0x28] sm:$0xff] %v349
    // Predicated region
    $region22: #{tpu_custom_call.1} parent=1 // pred_check
      _
    $region23: #{tpu_custom_call.1} parent=1 // pred_check_branch
      %357 = sbr.rel (0) target = $region25
    $region24: #{tpu_custom_call.1} parent=1 // pred_region
      %s359 = ssub.s32 768, 768
      %360 = vsyncadd [#allocation3], %s359
      %s361 = sshll.u32 [#allocation2], 4
      %s362 = int_to_ptr.vmem [resolvable:$true] %s361
      %367 = dma.vmem_to_hbm [thread:$0]  %s362, 768, %s5, [#allocation3], 256, 256, 16
    $region25: #{tpu_custom_call.1} parent=1 // pred_fallthru
      _
    // Predicated region
    $region26: #{tpu_custom_call.1} parent=1 // pred_check
      _
    $region27: #{tpu_custom_call.1} parent=1 // pred_check_branch
      %369 = sbr.rel (0) target = $region29
    $region28: #{tpu_custom_call.1} parent=1 // pred_region
      %370 = dma.done [#allocation3], 768
    $region29: #{tpu_custom_call.1} parent=1 // pred_fallthru
      _
    %371 = vsyncpa [#allocation3], 1

</llo_original>
